<compile_context>
chip_gen: v6e
topology: v6e:2x2x1
jax: 0.10.0
libtpu: 0.0.40
codegen_flags: <defaults>
</compile_context>

<pallas_src>
import functools

import jax
import jax.numpy as jnp
from jax.experimental import pallas as pl
from jax.experimental.pallas import tpu as pltpu


LANE = 128     # TPU lane width (last-dim granularity)
SUBLANE = 16   # covers both f32 (8,128) and bf16 (16,128) sublane packing


def _round_up(a, b):
    return ((a + b - 1) // b) * b


def _vmem_capacity_bytes():
    """Physical per-core VMEM; falls back to the smallest across gens (v7x, 64 MiB)."""
    try:
        cap = getattr(pltpu.get_tpu_info(), "vmem_capacity_bytes", None)
        if cap:
            return int(cap)
    except Exception:
        pass
    return 64 << 20


def _patch_embed_kernel(x_ref, w_ref, b_ref, o_ref):
    # x_ref: (tile_m, Kp) bf16 patch rows; w_ref: (Kp, tile_e) bf16 (resident);
    # b_ref: (1, tile_e) f32; o_ref: (tile_m, tile_e) in out dtype.
    acc = jnp.dot(x_ref[...], w_ref[...], preferred_element_type=jnp.float32)
    o_ref[...] = (acc + b_ref[...]).astype(o_ref.dtype)


def patch_embed(x, weight, bias, patch_size, *, compute_dtype=jnp.bfloat16,
                out_dtype=None, tile_m=None, aggressive=True):
    """ViT patch embedding == Conv2d(k=s=p) + flatten(2).transpose(1, 2).

    x: (B, C, H, W) NCHW. weight: (E, C, p, p). bias: (E,).
    Returns (B, num_patches, E) in `out_dtype` (defaults to x.dtype; pass
    jnp.bfloat16 to halve the output HBM stream when downstream accepts it).
    `aggressive=False` disables the single-buffered resident weight and the
    input-fusion hint (conservative fallback mode).
    """
    B, C, H, W = x.shape
    E = weight.shape[0]
    p = patch_size
    assert H % p == 0 and W % p == 0, "img_size must be divisible by patch_size"
    Hp, Wp = H // p, W // p
    num_patches = Hp * Wp
    K = C * p * p
    M = B * num_patches

    out_dtype = x.dtype if out_dtype is None else out_dtype
    out_itemsize = jnp.dtype(out_dtype).itemsize
    in_itemsize = jnp.dtype(compute_dtype).itemsize

    # ---- lane-align K and E.
    Kp = _round_up(K, LANE)
    Ep = _round_up(E, LANE)

    # ---- size tile_m from the per-generation VMEM budget; prefer a tile that
    # divides M so the pad over M and the trailing slice are no-ops.
    n_w_buf = 1 if aggressive else 2
    vmem_physical = _vmem_capacity_bytes()
    vmem_budget = int(vmem_physical * 0.7)   # headroom for compiler scratch

    def working_set(tm, te):
        return (2 * tm * Kp * in_itemsize          # x tile, double-buffered
                + 2 * tm * te * out_itemsize       # out tile, double-buffered
                + n_w_buf * Kp * te * in_itemsize  # resident weight
                + 2 * te * 4)                      # bias (f32)

    if tile_m is None:
        cap = SUBLANE
        tm = SUBLANE
        while tm <= 1024 and working_set(tm, Ep) <= vmem_budget:
            cap = tm
            tm += SUBLANE
        divisors = [d for d in range(SUBLANE, min(cap, M) + 1, SUBLANE)
                    if M % d == 0]
        two_plus = [d for d in divisors if M // d >= 2]   # keep >=2 M tiles
        if two_plus:
            tile_m = two_plus[-1]
        elif divisors:
            tile_m = divisors[-1]
        else:
            tile_m = min(cap, _round_up(M, SUBLANE))
    tile_m = max(SUBLANE, _round_up(tile_m, SUBLANE))
    Mp = _round_up(M, tile_m)
    grid_m = Mp // tile_m

    # ---- v7x small-M path: with a single M tile, split E across a second
    # parallel grid axis so both TensorCores get work (weight streamed once).
    tile_e, grid_e = Ep, 1
    ne = Ep // LANE
    if grid_m == 1 and ne >= 2:
        d = max(d for d in range(1, ne // 2 + 1) if ne % d == 0)
        tile_e, grid_e = d * LANE, ne // d

    resident = aggressive and grid_e == 1   # constant index maps -> 1 buffer

    # ---- glue: extract non-overlapping patches, flatten each in (c, ph, pw)
    # order to match Conv2d weight flattening.  With allow_input_fusion these
    # producers fuse into the kernel input instead of a separate HBM round trip.
    xp = x.reshape(B, C, Hp, p, Wp, p)
    xp = jnp.transpose(xp, (0, 2, 4, 1, 3, 5)).reshape(M, K)
    xp = jnp.pad(xp, ((0, Mp - M), (0, Kp - K))).astype(compute_dtype)

    # Conv2d weight (E, C, p, p) -> (K, E) padded; bias -> (1, Ep) kept in f32.
    w2d = jnp.transpose(weight.reshape(E, K), (1, 0))
    w2d = jnp.pad(w2d, ((0, Kp - K), (0, Ep - E))).astype(compute_dtype)
    b2d = jnp.pad(bias.reshape(1, E).astype(jnp.float32), ((0, 0), (0, Ep - E)))

    x_spec = pl.BlockSpec((tile_m, Kp), lambda i, j: (i, 0))
    if resident:
        w_spec = pl.BlockSpec((Kp, tile_e), lambda i, j: (0, j),
                              pipeline_mode=pl.Buffered(1))
        b_spec = pl.BlockSpec((1, tile_e), lambda i, j: (0, j),
                              pipeline_mode=pl.Buffered(1))
    else:
        w_spec = pl.BlockSpec((Kp, tile_e), lambda i, j: (0, j))
        b_spec = pl.BlockSpec((1, tile_e), lambda i, j: (0, j))

    # Raise the scoped VMEM limit only when the working set needs it
    # (v5e default 16 MiB, v6e/v7x 32 MiB).
    needed = working_set(tile_m, tile_e)
    vmem_limit = None
    if needed > (12 << 20):
        vmem_limit = int(min(max(2 * needed, 32 << 20),
                             int(vmem_physical * 0.9)))

    bytes_accessed = (xp.size * in_itemsize + w2d.size * in_itemsize
                      + b2d.size * 4 + Mp * Ep * out_itemsize)

    compiler_kwargs = dict(
        dimension_semantics=("parallel", "parallel"),
        vmem_limit_bytes=vmem_limit,
    )
    if aggressive:
        compiler_kwargs["allow_input_fusion"] = [True, True, True]

    out = pl.pallas_call(
        _patch_embed_kernel,
        out_shape=jax.ShapeDtypeStruct((Mp, Ep), out_dtype),
        grid_spec=pltpu.PrefetchScalarGridSpec(
            num_scalar_prefetch=0,
            grid=(grid_m, grid_e),
            in_specs=[x_spec, w_spec, b_spec],
            out_specs=pl.BlockSpec((tile_m, tile_e), lambda i, j: (i, j)),
        ),
        compiler_params=pltpu.CompilerParams(**compiler_kwargs),
        cost_estimate=pl.CostEstimate(
            flops=2 * Mp * Kp * Ep,
            transcendentals=0,
            bytes_accessed=bytes_accessed,
        ),
    )(xp, w2d, b2d)

    # No-ops when tile_m | M and E is already lane-aligned (e.g. ViT-B/L).
    return out[:M, :E].reshape(B, num_patches, E)


def patch_embed_ref(x, weight, bias, patch_size):
    """Pure-JAX reference: strided conv (NCHW) + flatten(2).transpose(1, 2)."""
    y = jax.lax.conv_general_dilated(
        x, weight,
        window_strides=(patch_size, patch_size),
        padding="VALID",
        dimension_numbers=("NCHW", "OIHW", "NCHW"),
    )
    y = y + bias.reshape(1, -1, 1, 1)
    B, E, Hp, Wp = y.shape
    return jnp.transpose(y.reshape(B, E, Hp * Wp), (0, 2, 1))


if __name__ == "__main__":
    # Small shapes consistent with the module: img_size=16, patch_size=4,
    # in_chans=4, embed_dim=32, batch=2  ->  num_patches = 16, K = 64.
    B, C, H, W = 2, 4, 16, 16
    patch_size = 4
    embed_dim = 32

    key = jax.random.PRNGKey(0)
    kx, kw, kb = jax.random.split(key, 3)

    x = jax.random.normal(kx, (B, C, H, W), dtype=jnp.float32)
    weight = jax.random.normal(
        kw, (embed_dim, C, patch_size, patch_size), dtype=jnp.float32) * 0.02
    bias = jax.random.normal(kb, (embed_dim,), dtype=jnp.float32) * 0.02

    def run(aggr, out_dtype=None):
        fn = jax.jit(functools.partial(
            patch_embed, patch_size=patch_size, aggressive=aggr,
            out_dtype=out_dtype))
        return jax.block_until_ready(fn(x, weight, bias))

    # Prefer the aggressive path (single-buffered resident weight + input
    # fusion); fall back to the conservative build if this JAX/Mosaic version
    # rejects either hint.
    try:
        out = run(True)
        mode = True
    except Exception:
        out = run(False)
        mode = False

    assert out.shape == (B, (H // patch_size) * (W // patch_size), embed_dim)

    # Apples-to-apples check: same bf16 rounding of activations/weight,
    # f32 accumulation in both paths.
    x_r = x.astype(jnp.bfloat16).astype(jnp.float32)
    w_r = weight.astype(jnp.bfloat16).astype(jnp.float32)
    ref = patch_embed_ref(x_r, w_r, bias, patch_size)
    assert jnp.allclose(out, ref, atol=1e-3, rtol=1e-3), "mismatch vs bf16-rounded ref"

    # Loose sanity check against the full-f32 conv reference.
    ref_f32 = patch_embed_ref(x, weight, bias, patch_size)
    assert jnp.allclose(out, ref_f32, atol=5e-2, rtol=5e-2), "mismatch vs f32 ref"

    # bf16-output fast path (half the output HBM stream) stays numerically sane.
    out_bf16 = run(mode, out_dtype=jnp.bfloat16)
    assert out_bf16.dtype == jnp.bfloat16
    assert jnp.allclose(out_bf16.astype(jnp.float32), ref, atol=1e-2, rtol=1e-2), \
        "mismatch vs ref (bf16 output)"

    print("KERNEL_OK")
</pallas_src>

<mosaic_0001>
module attributes {stable_mosaic.version = 11 : i64} {
  func.func @_patch_embed_kernel(%arg0: i32, %arg1: i32, %arg2: memref<16x128xbf16, #tpu.memory_space<vmem>>, %arg3: memref<128x128xbf16, #tpu.memory_space<vmem>>, %arg4: memref<1x128xf32, #tpu.memory_space<vmem>>, %arg5: memref<16x128xf32, #tpu.memory_space<vmem>>) attributes {dimension_semantics = [#tpu.dimension_semantics<parallel>, #tpu.dimension_semantics<parallel>], iteration_bounds = array<i64: 2, 1>, scalar_prefetch = 0 : i64, scratch_operands = 0 : i64, tpu.core_type = #tpu.core_type<tc>, window_params = [{transform_indices = @transform_0, window_bounds = array<i64: 16, 128>}, {pipeline_mode = #tpu.pipeline_mode<synchronous>, transform_indices = @transform_1, window_bounds = array<i64: 128, 128>}, {pipeline_mode = #tpu.pipeline_mode<synchronous>, transform_indices = @transform_2, window_bounds = array<i64: 1, 128>}, {transform_indices = @transform_3, window_bounds = array<i64: 16, 128>}]} {
    %c0 = arith.constant 0 : index
    %c0_0 = arith.constant 0 : index
    %0 = vector.load %arg2[%c0, %c0_0] : memref<16x128xbf16, #tpu.memory_space<vmem>>, vector<16x128xbf16>
    %c0_1 = arith.constant 0 : index
    %c0_2 = arith.constant 0 : index
    %1 = vector.load %arg3[%c0_1, %c0_2] : memref<128x128xbf16, #tpu.memory_space<vmem>>, vector<128x128xbf16>
    %cst = arith.constant dense<0.000000e+00> : vector<16x128xf32>
    %2 = tpu.matmul %0, %1, %cst {dimension_numbers = #tpu.dot_dimension_numbers<[1], [0], [0], [1], [0, 0, 1, 1], [], []>} : vector<16x128xbf16>, vector<128x128xbf16>, vector<16x128xf32> -> vector<16x128xf32>
    %c0_3 = arith.constant 0 : index
    %c0_4 = arith.constant 0 : index
    %3 = vector.load %arg4[%c0_3, %c0_4] : memref<1x128xf32, #tpu.memory_space<vmem>>, vector<1x128xf32>
    %4 = vector.broadcast %3 : vector<1x128xf32> to vector<16x128xf32>
    %5 = arith.addf %2, %4 : vector<16x128xf32>
    %c0_5 = arith.constant 0 : index
    %c0_6 = arith.constant 0 : index
    %6 = vector.load %arg5[%c0_5, %c0_6] : memref<16x128xf32, #tpu.memory_space<vmem>>, vector<16x128xf32>
    tpu.vector_store %arg5[%c0_5, %c0_6], %5 {strides = array<i32>} : memref<16x128xf32, #tpu.memory_space<vmem>>, vector<16x128xf32>,
    return
  }
  func.func @transform_0(%arg0: i32, %arg1: i32) -> (i32, i32) {
    %c0_i32 = arith.constant 0 : i32
    %c0_i32_0 = arith.constant 0 : i32
    return %arg0, %c0_i32 : i32, i32
  }
  func.func @transform_1(%arg0: i32, %arg1: i32) -> (i32, i32) {
    %c0_i32 = arith.constant 0 : i32
    %c0_i32_0 = arith.constant 0 : i32
    return %c0_i32, %arg1 : i32, i32
  }
  func.func @transform_2(%arg0: i32, %arg1: i32) -> (i32, i32) {
    %c0_i32 = arith.constant 0 : i32
    %c0_i32_0 = arith.constant 0 : i32
    return %c0_i32, %arg1 : i32, i32
  }
  func.func @transform_3(%arg0: i32, %arg1: i32) -> (i32, i32) {
    %c0_i32 = arith.constant 0 : i32
    return %arg0, %arg1 : i32, i32
  }
}

module attributes {stable_mosaic.version = 11 : i64} {
  func.func @_patch_embed_kernel(%arg0: i32, %arg1: i32, %arg2: memref<16x128xbf16, #tpu.memory_space<vmem>>, %arg3: memref<128x128xbf16, #tpu.memory_space<vmem>>, %arg4: memref<1x128xf32, #tpu.memory_space<vmem>>, %arg5: memref<16x128xf32, #tpu.memory_space<vmem>>) attributes {dimension_semantics = [#tpu.dimension_semantics<parallel>, #tpu.dimension_semantics<parallel>], iteration_bounds = array<i64: 2, 1>, scalar_prefetch = 0 : i64, scratch_operands = 0 : i64, tpu.core_type = #tpu.core_type<tc>, window_params = [{transform_indices = @transform_0, window_bounds = array<i64: 16, 128>}, {transform_indices = @transform_1, window_bounds = array<i64: 128, 128>}, {transform_indices = @transform_2, window_bounds = array<i64: 1, 128>}, {transform_indices = @transform_3, window_bounds = array<i64: 16, 128>}]} {
    %c0 = arith.constant 0 : index
    %c0_0 = arith.constant 0 : index
    %0 = vector.load %arg2[%c0, %c0_0] : memref<16x128xbf16, #tpu.memory_space<vmem>>, vector<16x128xbf16>
    %c0_1 = arith.constant 0 : index
    %c0_2 = arith.constant 0 : index
    %1 = vector.load %arg3[%c0_1, %c0_2] : memref<128x128xbf16, #tpu.memory_space<vmem>>, vector<128x128xbf16>
    %cst = arith.constant dense<0.000000e+00> : vector<16x128xf32>
    %2 = tpu.matmul %0, %1, %cst {dimension_numbers = #tpu.dot_dimension_numbers<[1], [0], [0], [1], [0, 0, 1, 1], [], []>} : vector<16x128xbf16>, vector<128x128xbf16>, vector<16x128xf32> -> vector<16x128xf32>
    %c0_3 = arith.constant 0 : index
    %c0_4 = arith.constant 0 : index
    %3 = vector.load %arg4[%c0_3, %c0_4] : memref<1x128xf32, #tpu.memory_space<vmem>>, vector<1x128xf32>
    %4 = vector.broadcast %3 : vector<1x128xf32> to vector<16x128xf32>
    %5 = arith.addf %2, %4 : vector<16x128xf32>
    %c0_5 = arith.constant 0 : index
    %c0_6 = arith.constant 0 : index
    %6 = vector.load %arg5[%c0_5, %c0_6] : memref<16x128xf32, #tpu.memory_space<vmem>>, vector<16x128xf32>
    tpu.vector_store %arg5[%c0_5, %c0_6], %5 {strides = array<i32>} : memref<16x128xf32, #tpu.memory_space<vmem>>, vector<16x128xf32>,
    return
  }
  func.func @transform_0(%arg0: i32, %arg1: i32) -> (i32, i32) {
    %c0_i32 = arith.constant 0 : i32
    %c0_i32_0 = arith.constant 0 : i32
    return %arg0, %c0_i32 : i32, i32
  }
  func.func @transform_1(%arg0: i32, %arg1: i32) -> (i32, i32) {
    %c0_i32 = arith.constant 0 : i32
    %c0_i32_0 = arith.constant 0 : i32
    return %c0_i32, %arg1 : i32, i32
  }
  func.func @transform_2(%arg0: i32, %arg1: i32) -> (i32, i32) {
    %c0_i32 = arith.constant 0 : i32
    %c0_i32_0 = arith.constant 0 : i32
    return %c0_i32, %arg1 : i32, i32
  }
  func.func @transform_3(%arg0: i32, %arg1: i32) -> (i32, i32) {
    %c0_i32 = arith.constant 0 : i32
    return %arg0, %arg1 : i32, i32
  }
}

</mosaic_0001>

<llo_original>
// kernel: patch_embed.2
$region0: #{patch_embed.2}
  #allocation0 [shape = 'u32[]', space=smem, size = 0x4, offset = 0x4, fixed_abs, tag = 'smem constant byte address 0x4 - core index']
  #allocation1 [shape = 'u32[144,128]{1,0:T(1,128)}', space=vmem, size = 0x12000, scoped, tag = 'internal scratch']
  #allocation2 [shape = 'u32[2048]{0}', space=vmem, size = 0x2000, scoped, tag = 'scoped memory for patch_embed.2']
  #allocation3 [shape = 'u32[2048]{0}', space=vmem, size = 0x2000, scoped, tag = 'scoped memory for patch_embed.2']
  #allocation4 [shape = 'u32[2048]{0}', space=vmem, size = 0x2000, scoped, tag = 'scoped memory for patch_embed.2']
  #allocation5 [shape = 'u32[2048]{0}', space=vmem, size = 0x2000, scoped, tag = 'scoped memory for patch_embed.2']
  #allocation6 [shape = 'u32[2048]{0}', space=vmem, size = 0x2000, scoped, tag = 'scoped memory for patch_embed.2']
  #allocation7 [shape = 'u32[2048]{0}', space=vmem, size = 0x2000, scoped, tag = 'scoped memory for patch_embed.2']
  #allocation8 [shape = 'u32[2048]{0}', space=vmem, size = 0x2000, scoped, tag = 'scoped memory for patch_embed.2']
  #allocation9 [shape = 'u32[2048]{0}', space=vmem, size = 0x2000, scoped, tag = 'scoped memory for patch_embed.2']
  #allocation10 [shape = 'u32[2048]{0}', space=vmem, size = 0x2000, scoped, tag = 'scoped memory for patch_embed.2']
  #allocation11 [shape = 'u32[2048]{0}', space=vmem, size = 0x2000, scoped, tag = 'scoped memory for patch_embed.2']
  #allocation12 [shape = 'u32[2048]{0}', space=vmem, size = 0x2000, scoped, tag = 'scoped memory for patch_embed.2']
  #allocation13 [shape = 'u32[2048]{0}', space=vmem, size = 0x2000, scoped, tag = 'scoped memory for patch_embed.2']
  #allocation14 [shape = 'u32[2048]{0}', space=vmem, size = 0x2000, scoped, tag = 'scoped memory for patch_embed.2']
  #allocation15 [shape = 'u32[2048]{0}', space=vmem, size = 0x2000, scoped, tag = 'scoped memory for patch_embed.2']
  #allocation16 [shape = 'u32[2048]{0}', space=vmem, size = 0x2000, scoped, tag = 'scoped memory for patch_embed.2']
  %s0 = inlined_call_operand.vmem [shape: bf16[64,32], index: 0, kind: input, shape index: {}]
  %s1 = inlined_call_operand.<no memory space> [shape: bf16[], index: 1, kind: input, shape index: {}]
  %s2 = inlined_call_operand.vmem [shape: bf16[32,64], index: 2, kind: input, shape index: {}]
  %s3 = inlined_call_operand.vmem [shape: f32[1,32], index: 3, kind: input, shape index: {}]
  %s4 = inlined_call_operand.<no memory space> [shape: f32[], index: 4, kind: input, shape index: {}]
  %s5 = inlined_call_operand.hbm [shape: f32[32,128], index: 5, kind: output, shape index: {}]
  %s6 = sld [smem:[#allocation0]]
  $region45: #{patch_embed.2} parent=0
    _
  %s8 = ssub.s32 1, %s6
  %s9 = scalar_select 0, %s8, %s6
  %v10 = vstv %s1
  %v11 = vunpack.i.l.bf16 %v10
  %v13 = vunpack.i.h.bf16 %v10
  %v15 = vstv %s1
  %v16 = vunpack.i.l.bf16 %v15
  %v18 = vunpack.i.h.bf16 %v15
  %v20 = vstv %s4
  $region1: #{patch_embed.2} parent=0
    #allocation17 [shape = 'u8[16384]{0}', space=vmem, size = 0x4000, scoped, tag = 'output window, operand 0']
    #allocation18 [shape = 's32[2]{0}', space=sflag, size = 0x8, scoped, tag = 'scoped memory for patch_embed.2']
    %21 = vsyncpa [#allocation18], 0
    %s22 = scalar_lea.sflag [#allocation18], 1
    %23 = vsyncpa %s22, 0
    loop: start=0, step=1, limit=4
    $region2: #{patch_embed.2} parent=1 // loop_pre_header
      _
    $region3: #{patch_embed.2} parent=1 // loop_header
      %s25 = sphi 0, %s29
      %p26 = scmp.ge.s32.totalorder %s25, 4
      %s32 = sphi 0, %s44
      %s33 = sphi 0, %s40
      %s34 = sphi 0, %s32
      %s35 = sphi 0, %s33
      %s36 = sphi 0, %s34
      %s37 = sphi 0, %s35
      %s47 = sphi 0, %s49
      %s50 = sphi 0, %s47
      %s51 = sphi 0, %s50
      %s67 = sphi 0, %s51
      %s73 = sphi 0, %s75
      %s76 = sphi 0, %s73
      %s77 = sphi 0, %s76
      %s93 = sphi 0, %s77
      %s99 = sphi 0, %s101
      %s102 = sphi 0, %s99
      %s103 = sphi 0, %s102
      %s119 = sphi 0, %s103
      %s127 = sphi 0, %s129
      %s130 = sphi 0, %s127
      %s131 = sphi 0, %s130
      %s147 = sphi 0, %s131
    $region4: #{patch_embed.2} parent=1 // loop_header_branch
      %28 = sbr.rel (%p26) target = $region8
    $region5: #{patch_embed.2} parent=1 // loop_body
      %s30 = ssub.s32 %s25, 1
      %s31 = ssub.s32 %s25, 2
      %s38 = sadd.s32 1, %s33
      %p39 = scmp.ge.s32.totalorder %s38, 1
      %s40 = scalar_select %p39, 0, %s38
      %s41 = sadd.s32 1, %s32
      %s42 = scalar_select %p39, %s41, %s32
      %p43 = scmp.ge.s32.totalorder %s42, 2
      %s44 = scalar_select %p43, 0, %s42
      %s45 = ssub.s32 %s32, %s44
      %p46 = scmp.eq.s32.totalorder %s45, 0
      %s48 = sadd.s32 %s47, 1
      %s49 = scalar_select %p46, %s47, %s48
      %p52 = pneg %p46
      %p53 = scmp.eq.s32.totalorder %s25, 1
      %p54 = por %p52, %p53
      %p55 = scmp.ne.s32.totalorder %s47, %s50
      %p56 = scmp.eq.s32.totalorder %s25, 0
      %p57 = por %p55, %p56
      %p58 = scmp.ne.s32.totalorder %s47, %s50
      %p59 = scmp.eq.s32.totalorder %s30, 1
      %p60 = por %p58, %p59
      %p61 = scmp.ne.s32.totalorder %s50, %s51
      %p62 = scmp.eq.s32.totalorder %s30, 0
      %p63 = por %p61, %p62
      %p64 = scmp.ne.s32.totalorder %s50, %s51
      %p65 = scmp.eq.s32.totalorder %s31, 1
      %p66 = por %p64, %p65
      %p68 = scmp.ne.s32.totalorder %s51, %s67
      %p69 = scmp.eq.s32.totalorder %s31, 0
      %p70 = por %p68, %p69
      %s71 = ssub.s32 %s33, %s40
      %p72 = scmp.eq.s32.totalorder %s71, 0
      %s74 = sadd.s32 %s73, 1
      %s75 = scalar_select %p72, %s73, %s74
      %p78 = pneg %p72
      %p79 = scmp.eq.s32.totalorder %s25, 1
      %p80 = por %p78, %p79
      %p81 = scmp.ne.s32.totalorder %s73, %s76
      %p82 = scmp.eq.s32.totalorder %s25, 0
      %p83 = por %p81, %p82
      %p84 = scmp.ne.s32.totalorder %s73, %s76
      %p85 = scmp.eq.s32.totalorder %s30, 1
      %p86 = por %p84, %p85
      %p87 = scmp.ne.s32.totalorder %s76, %s77
      %p88 = scmp.eq.s32.totalorder %s30, 0
      %p89 = por %p87, %p88
      %p90 = scmp.ne.s32.totalorder %s76, %s77
      %p91 = scmp.eq.s32.totalorder %s31, 1
      %p92 = por %p90, %p91
      %p94 = scmp.ne.s32.totalorder %s77, %s93
      %p95 = scmp.eq.s32.totalorder %s31, 0
      %p96 = por %p94, %p95
      %s97 = ssub.s32 %s33, %s40
      %p98 = scmp.eq.s32.totalorder %s97, 0
      %s100 = sadd.s32 %s99, 1
      %s101 = scalar_select %p98, %s99, %s100
      %p104 = pneg %p98
      %p105 = scmp.eq.s32.totalorder %s25, 1
      %p106 = por %p104, %p105
      %p107 = scmp.ne.s32.totalorder %s99, %s102
      %p108 = scmp.eq.s32.totalorder %s25, 0
      %p109 = por %p107, %p108
      %p110 = scmp.ne.s32.totalorder %s99, %s102
      %p111 = scmp.eq.s32.totalorder %s30, 1
      %p112 = por %p110, %p111
      %p113 = scmp.ne.s32.totalorder %s102, %s103
      %p114 = scmp.eq.s32.totalorder %s30, 0
      %p115 = por %p113, %p114
      %p116 = scmp.ne.s32.totalorder %s102, %s103
      %p117 = scmp.eq.s32.totalorder %s31, 1
      %p118 = por %p116, %p117
      %p120 = scmp.ne.s32.totalorder %s103, %s119
      %p121 = scmp.eq.s32.totalorder %s31, 0
      %p122 = por %p120, %p121
      %s123 = ssub.s32 %s32, %s44
      %s124 = ssub.s32 %s33, %s40
      %s125 = sor.u32 %s123, %s124
      %p126 = scmp.eq.s32.totalorder %s125, 0
      %s128 = sadd.s32 %s127, 1
      %s129 = scalar_select %p126, %s127, %s128
      %p132 = pneg %p126
      %p133 = scmp.eq.s32.totalorder %s25, 1
      %p134 = por %p132, %p133
      %p135 = scmp.ne.s32.totalorder %s127, %s130
      %p136 = scmp.eq.s32.totalorder %s25, 0
      %p137 = por %p135, %p136
      %p138 = scmp.ne.s32.totalorder %s127, %s130
      %p139 = scmp.eq.s32.totalorder %s30, 1
      %p140 = por %p138, %p139
      %p141 = scmp.ne.s32.totalorder %s130, %s131
      %p142 = scmp.eq.s32.totalorder %s30, 0
      %p143 = por %p141, %p142
      %p144 = scmp.ne.s32.totalorder %s130, %s131
      %p145 = scmp.eq.s32.totalorder %s31, 1
      %p146 = por %p144, %p145
      %p148 = scmp.ne.s32.totalorder %s131, %s147
      %p149 = scmp.eq.s32.totalorder %s31, 0
      %p150 = por %p148, %p149
      %p151 = scmp.le.s32.totalorder 1, %s25
      %p152 = scmp.lt.s32.totalorder %s25, 3
      %p153 = pnand %p151, %p152
      %p154 = pneg %p153
      // Predicated region
      $region9: #{patch_embed.2} parent=5 // pred_check
        _
      $region10: #{patch_embed.2} parent=5 // pred_check_branch
        %156 = sbr.rel (%p153) target = $region12
      $region11: #{patch_embed.2} parent=5 // pred_region
        %s157 = ssub.s32 %s25, 1
        // Predicated region
        $region13: #{patch_embed.2} parent=11 // pred_check
          %p158 = pneg %p89
        $region14: #{patch_embed.2} parent=11 // pred_check_branch
          %160 = sbr.rel (%p158) target = $region16
        $region15: #{patch_embed.2} parent=11 // pred_region
          %s161 = ssub.s32 1, %s35
          %s162 = smul.u32 512, %s161
          %p163 = scmp.lt.s32.totalorder %s35, 0
          %s164 = scalar_select %p163, %s35, 0
          %s165 = smul.addr %s164, 4
          %s166 = scalar_lea.vmem %s0, %s165
          %s167 = ssub.s32 1, %s35
          %s168 = smul.u32 512, %s167
        $region16: #{patch_embed.2} parent=11 // pred_fallthru
          _
        // Predicated region
        $region17: #{patch_embed.2} parent=11 // pred_check
          %p169 = pneg %p115
        $region18: #{patch_embed.2} parent=11 // pred_check_branch
          %171 = sbr.rel (%p169) target = $region20
        $region19: #{patch_embed.2} parent=11 // pred_region
          %s172 = ssub.s32 1, %s35
          %s173 = smul.u32 16, %s172
          %p174 = scmp.lt.s32.totalorder %s35, 0
          %s175 = scalar_select %p174, %s35, 0
          %s176 = scalar_lea.vmem %s3, %s175
          %s177 = ssub.s32 1, %s35
          %s178 = smul.u32 16, %s177
        $region20: #{patch_embed.2} parent=11 // pred_fallthru
          _
      $region12: #{patch_embed.2} parent=5 // pred_fallthru
        _
      %p179 = scmp.lt.s32.totalorder %s25, 2
      // Predicated region
      $region21: #{patch_embed.2} parent=5 // pred_check
        %p180 = pneg %p179
      $region22: #{patch_embed.2} parent=5 // pred_check_branch
        %182 = sbr.rel (%p180) target = $region24
      $region23: #{patch_embed.2} parent=5 // pred_region
        // Predicated region
        $region25: #{patch_embed.2} parent=23 // pred_check
          %p183 = pneg %p57
        $region26: #{patch_embed.2} parent=23 // pred_check_branch
          %185 = sbr.rel (%p183) target = $region28
        $region27: #{patch_embed.2} parent=23 // pred_region
          %s186 = smul.u32 2, %s32
          %p187 = scmp.lt.s32.totalorder %s186, 3
          %s188 = scalar_select %p187, %s186, 3
          %s189 = smul.addr %s188, 4
          %s190 = scalar_lea.vmem %s2, %s189
          %s191 = smul.u32 2, %s32
        $region28: #{patch_embed.2} parent=23 // pred_fallthru
          _
      $region24: #{patch_embed.2} parent=5 // pred_fallthru
        _
      %p192 = scmp.le.s32.totalorder 1, %s25
      %p193 = scmp.lt.s32.totalorder %s25, 3
      %p194 = pnand %p192, %p193
      %p195 = pneg %p194
      // Predicated region
      $region29: #{patch_embed.2} parent=5 // pred_check
        _
      $region30: #{patch_embed.2} parent=5 // pred_check_branch
        %197 = sbr.rel (%p194) target = $region32
      $region31: #{patch_embed.2} parent=5 // pred_region
        #allocation19 [shape = 'u8[4096]{0}', space=vmem, size = 0x1000, dematerialized = true, scoped, tag = 'FusionAdapter Buffer %fusion.2 = bf16[32,128]{1,0:T(8,128)(2,1)} fusion(%param_2.3, %param_1.5), kind=kLoop, calls=%fused_computation.3.clone, metadata={op_name="jit(patch_embed)/jit(_pad)/pad" stack_frame_id=10}']
        #allocation20 [shape = 'u8[32768]{0}', space=vmem, size = 0x8000, dematerialized = true, scoped, tag = 'FusionAdapter Buffer %fusion.1 = bf16[128,128]{1,0:T(8,128)(2,1)} fusion(%param_0.6, %param_1.5), kind=kLoop, calls=%fused_computation.2.clone, metadata={op_name="jit(patch_embed)/jit(_pad)/pad" stack_frame_id=14}']
        #allocation21 [shape = 'u8[512]{0}', space=vmem, size = 0x400, dematerialized = true, scoped, tag = 'FusionAdapter Buffer %fusion.3 = f32[1,128]{1,0:T(1,128)} fusion(%param_3.2, %param_4), kind=kLoop, calls=%fused_computation.4.clone, metadata={op_name="jit(patch_embed)/jit(_pad)/pad" stack_frame_id=17}']
        %s198 = ssub.s32 %s25, 1
        %s199 = smul.u32 2, %s34
        %p200 = scmp.lt.s32.totalorder %s199, 3
        %s201 = scalar_select %p200, %s199, 3
        %s202 = smul.addr %s201, 4
        %s203 = scalar_lea.vmem %s2, %s202
        %p204 = pneg %p63
        %p205 = pneg %p60
        %s206 = ssub.s32 1, %s35
        %s207 = smul.u32 512, %s206
        %p208 = scmp.lt.s32.totalorder %s35, 0
        %s209 = scalar_select %p208, %s35, 0
        %s210 = smul.addr %s209, 4
        %s211 = scalar_lea.vmem %s0, %s210
        %p212 = pneg %p89
        %p213 = pneg %p86
        %s214 = ssub.s32 1, %s35
        %s215 = smul.u32 16, %s214
        %p216 = scmp.lt.s32.totalorder %s35, 0
        %s217 = scalar_select %p216, %s35, 0
        %s218 = scalar_lea.vmem %s3, %s217
        %p219 = pneg %p115
        %p220 = pneg %p112
        %p221 = pneg %p143
        %p222 = pneg %p140
        %s223 = sand.u32 %s130, 1
        %s224 = scalar_lea.sflag [#allocation18], %s223
        %s225 = sand.u32 %s130, 1
        %s226 = smul.addr %s225, 16
        %s227 = scalar_lea.vmem [#allocation17], %s226
        %s228 = smul.u32 2, %s34
        %p229 = scmp.lt.s32.totalorder %s228, 3
        %s230 = scalar_select %p229, %s228, 3
        %s231 = smul.addr %s230, 4
        %s232 = scalar_lea.vmem %s2, %s231
        %s233 = smul.u32 2, %s34
        %s234 = ssub.s32 1, %s35
        %s235 = smul.u32 512, %s234
        %p236 = scmp.lt.s32.totalorder %s35, 0
        %s237 = scalar_select %p236, %s35, 0
        %s238 = smul.addr %s237, 4
        %s239 = scalar_lea.vmem %s0, %s238
        %s240 = ssub.s32 1, %s35
        %s241 = smul.u32 512, %s240
        %s242 = ssub.s32 1, %s35
        %s243 = smul.u32 16, %s242
        %p244 = scmp.lt.s32.totalorder %s35, 0
        %s245 = scalar_select %p244, %s35, 0
        %s246 = scalar_lea.vmem %s3, %s245
        %s247 = ssub.s32 1, %s35
        %s248 = smul.u32 16, %s247
        %s249 = smul.u32 2, %s34
        %s251 = sor.u32 255, 127
        %s252 = sand.u32 %s251, 85
        %s253 = sshrl.u32 %s252, 1
        %s254 = sor.u32 %s252, %s253
        %s255 = sand.u32 51, %s254
        %s256 = sshrl.u32 %s255, 2
        %s257 = sor.u32 %s255, %s256
        %s258 = sand.u32 15, %s257
        %v259 = vld [vmem:[%s232] sm:%s258]
        %v260 = vunpack.c.l.bf16 %v259
        %v261 = vunpack.c.h.bf16 %v259
        %v262 = vlaneseq
        %v263 = vand.u32 %v262, 127
        %vm265 = vcmp.lt.s32.totalorder %v263, 64
        %v266 = vsel %vm265, %v260, %v11
        %v267 = vpack.c.bf16 0.0, %v266
        %s269 = ssub.s32 16, 1
        %270 = vst [vmem:[#allocation19] sm:%s269] %v267
        %s271 = scalar_lea.vmem %s232, 4
        %s273 = sor.u32 255, 127
        %s274 = sand.u32 %s273, 85
        %s275 = sshrl.u32 %s274, 1
        %s276 = sor.u32 %s274, %s275
        %s277 = sand.u32 51, %s276
        %s278 = sshrl.u32 %s277, 2
        %s279 = sor.u32 %s277, %s278
        %s280 = sand.u32 15, %s279
        %v281 = vld [vmem:[%s271] sm:%s280]
        %v282 = vunpack.c.l.bf16 %v281
        %v283 = vunpack.c.h.bf16 %v281
        %v284 = vlaneseq
        %v285 = vand.u32 %v284, 127
        %vm287 = vcmp.lt.s32.totalorder %v285, 64
        %v288 = vsel %vm287, %v282, %v11
        %s289 = scalar_lea.vmem [#allocation19], 4
        %v290 = vpack.c.bf16 0.0, %v288
        %s292 = ssub.s32 16, 1
        %293 = vst [vmem:[%s289] sm:%s292] %v290
        %s294 = ssub.s32 0, %s35
        %s295 = sor.u32 7, %s294
        %p296 = scmp.lt.s32.totalorder %s295, 0
        %s297 = scalar_select %p296, 0, 255
        %s298 = sshrl.u32 %s297, 1
        %s299 = sor.u32 %s297, %s298
        %s300 = sand.u32 %s299, 85
        %s301 = sshrl.u32 %s300, 1
        %s302 = sor.u32 %s300, %s301
        %s303 = sand.u32 51, %s302
        %s304 = sshrl.u32 %s303, 2
        %s305 = sor.u32 %s303, %s304
        %s306 = sand.u32 15, %s305
        %v307 = vld [vmem:[%s239] sm:%s306]
        %v308 = vunpack.c.l.bf16 %v307
        %v309 = vunpack.c.h.bf16 %v307
        %s310 = ssub.s32 0, %s35
        %s311 = sor.u32 7, %s310
        %v312 = vstv %s311
        %vm313 = vcmp.lt.s32.totalorder %v312, 0
        %v314 = vsel %vm313, %v16, %v308
        %s315 = smul.addr %s35, 128
        %v316 = vlaneseq
        %v317 = vand.u32 %v316, 127
        %v318 = vstv %s315
        %v319 = vadd.s32 %v317, %v318
        %vm320 = vcmp.lt.s32.totalorder %v319, 32
        %v321 = vsel %vm320, %v314, %v16
        %v322 = vpack.c.bf16 0.0, %v321
        %s324 = ssub.s32 16, 1
        %325 = vst [vmem:[#allocation20] sm:%s324] %v322
        %s326 = scalar_lea.vmem %s239, 4
        %s327 = ssub.s32 0, %s35
        %s328 = sor.u32 6, %s327
        %p329 = scmp.lt.s32.totalorder %s328, 0
        %s330 = scalar_select %p329, 0, 255
        %s331 = sshrl.u32 %s330, 1
        %s332 = sor.u32 %s330, %s331
        %s333 = sand.u32 %s332, 85
        %s334 = sshrl.u32 %s333, 1
        %s335 = sor.u32 %s333, %s334
        %s336 = sand.u32 51, %s335
        %s337 = sshrl.u32 %s336, 2
        %s338 = sor.u32 %s336, %s337
        %s339 = sand.u32 15, %s338
        %v340 = vld [vmem:[%s326] sm:%s339]
        %v341 = vunpack.c.l.bf16 %v340
        %v342 = vunpack.c.h.bf16 %v340
        %s343 = ssub.s32 0, %s35
        %s344 = sor.u32 6, %s343
        %v345 = vstv %s344
        %vm346 = vcmp.lt.s32.totalorder %v345, 0
        %v347 = vsel %vm346, %v16, %v341
        %s348 = smul.addr %s35, 128
        %v349 = vlaneseq
        %v350 = vand.u32 %v349, 127
        %v351 = vstv %s348
        %v352 = vadd.s32 %v350, %v351
        %vm353 = vcmp.lt.s32.totalorder %v352, 32
        %v354 = vsel %vm353, %v347, %v16
        %s355 = scalar_lea.vmem [#allocation20], 4
        %v356 = vpack.c.bf16 0.0, %v354
        %s358 = ssub.s32 16, 1
        %359 = vst [vmem:[%s355] sm:%s358] %v356
        %s360 = scalar_lea.vmem %s239, 8
        %s361 = ssub.s32 0, %s35
        %s362 = sor.u32 5, %s361
        %p363 = scmp.lt.s32.totalorder %s362, 0
        %s364 = scalar_select %p363, 0, 255
        %s365 = sshrl.u32 %s364, 1
        %s366 = sor.u32 %s364, %s365
        %s367 = sand.u32 %s366, 85
        %s368 = sshrl.u32 %s367, 1
        %s369 = sor.u32 %s367, %s368
        %s370 = sand.u32 51, %s369
        %s371 = sshrl.u32 %s370, 2
        %s372 = sor.u32 %s370, %s371
        %s373 = sand.u32 15, %s372
        %v374 = vld [vmem:[%s360] sm:%s373]
        %v375 = vunpack.c.l.bf16 %v374
        %v376 = vunpack.c.h.bf16 %v374
        %s377 = ssub.s32 0, %s35
        %s378 = sor.u32 5, %s377
        %v379 = vstv %s378
        %vm380 = vcmp.lt.s32.totalorder %v379, 0
        %v381 = vsel %vm380, %v16, %v375
        %s382 = smul.addr %s35, 128
        %v383 = vlaneseq
        %v384 = vand.u32 %v383, 127
        %v385 = vstv %s382
        %v386 = vadd.s32 %v384, %v385
        %vm387 = vcmp.lt.s32.totalorder %v386, 32
        %v388 = vsel %vm387, %v381, %v16
        %s389 = scalar_lea.vmem [#allocation20], 8
        %v390 = vpack.c.bf16 0.0, %v388
        %s392 = ssub.s32 16, 1
        %393 = vst [vmem:[%s389] sm:%s392] %v390
        %s394 = scalar_lea.vmem %s239, 12
        %s395 = ssub.s32 0, %s35
        %s396 = sor.u32 4, %s395
        %p397 = scmp.lt.s32.totalorder %s396, 0
        %s398 = scalar_select %p397, 0, 255
        %s399 = sshrl.u32 %s398, 1
        %s400 = sor.u32 %s398, %s399
        %s401 = sand.u32 %s400, 85
        %s402 = sshrl.u32 %s401, 1
        %s403 = sor.u32 %s401, %s402
        %s404 = sand.u32 51, %s403
        %s405 = sshrl.u32 %s404, 2
        %s406 = sor.u32 %s404, %s405
        %s407 = sand.u32 15, %s406
        %v408 = vld [vmem:[%s394] sm:%s407]
        %v409 = vunpack.c.l.bf16 %v408
        %v410 = vunpack.c.h.bf16 %v408
        %s411 = ssub.s32 0, %s35
        %s412 = sor.u32 4, %s411
        %v413 = vstv %s412
        %vm414 = vcmp.lt.s32.totalorder %v413, 0
        %v415 = vsel %vm414, %v16, %v409
        %s416 = smul.addr %s35, 128
        %v417 = vlaneseq
        %v418 = vand.u32 %v417, 127
        %v419 = vstv %s416
        %v420 = vadd.s32 %v418, %v419
        %vm421 = vcmp.lt.s32.totalorder %v420, 32
        %v422 = vsel %vm421, %v415, %v16
        %s423 = scalar_lea.vmem [#allocation20], 12
        %v424 = vpack.c.bf16 0.0, %v422
        %s426 = ssub.s32 16, 1
        %427 = vst [vmem:[%s423] sm:%s426] %v424
        %s428 = scalar_lea.vmem %s239, 16
        %s429 = ssub.s32 0, %s35
        %s430 = sor.u32 3, %s429
        %p431 = scmp.lt.s32.totalorder %s430, 0
        %s432 = scalar_select %p431, 0, 255
        %s433 = sshrl.u32 %s432, 1
        %s434 = sor.u32 %s432, %s433
        %s435 = sand.u32 %s434, 85
        %s436 = sshrl.u32 %s435, 1
        %s437 = sor.u32 %s435, %s436
        %s438 = sand.u32 51, %s437
        %s439 = sshrl.u32 %s438, 2
        %s440 = sor.u32 %s438, %s439
        %s441 = sand.u32 15, %s440
        %v442 = vld [vmem:[%s428] sm:%s441]
        %v443 = vunpack.c.l.bf16 %v442
        %v444 = vunpack.c.h.bf16 %v442
        %s445 = ssub.s32 0, %s35
        %s446 = sor.u32 3, %s445
        %v447 = vstv %s446
        %vm448 = vcmp.lt.s32.totalorder %v447, 0
        %v449 = vsel %vm448, %v16, %v443
        %s450 = smul.addr %s35, 128
        %v451 = vlaneseq
        %v452 = vand.u32 %v451, 127
        %v453 = vstv %s450
        %v454 = vadd.s32 %v452, %v453
        %vm455 = vcmp.lt.s32.totalorder %v454, 32
        %v456 = vsel %vm455, %v449, %v16
        %s457 = scalar_lea.vmem [#allocation20], 16
        %v458 = vpack.c.bf16 0.0, %v456
        %s460 = ssub.s32 16, 1
        %461 = vst [vmem:[%s457] sm:%s460] %v458
        %s462 = scalar_lea.vmem %s239, 20
        %s463 = ssub.s32 0, %s35
        %s464 = sor.u32 2, %s463
        %p465 = scmp.lt.s32.totalorder %s464, 0
        %s466 = scalar_select %p465, 0, 255
        %s467 = sshrl.u32 %s466, 1
        %s468 = sor.u32 %s466, %s467
        %s469 = sand.u32 %s468, 85
        %s470 = sshrl.u32 %s469, 1
        %s471 = sor.u32 %s469, %s470
        %s472 = sand.u32 51, %s471
        %s473 = sshrl.u32 %s472, 2
        %s474 = sor.u32 %s472, %s473
        %s475 = sand.u32 15, %s474
        %v476 = vld [vmem:[%s462] sm:%s475]
        %v477 = vunpack.c.l.bf16 %v476
        %v478 = vunpack.c.h.bf16 %v476
        %s479 = ssub.s32 0, %s35
        %s480 = sor.u32 2, %s479
        %v481 = vstv %s480
        %vm482 = vcmp.lt.s32.totalorder %v481, 0
        %v483 = vsel %vm482, %v16, %v477
        %s484 = smul.addr %s35, 128
        %v485 = vlaneseq
        %v486 = vand.u32 %v485, 127
        %v487 = vstv %s484
        %v488 = vadd.s32 %v486, %v487
        %vm489 = vcmp.lt.s32.totalorder %v488, 32
        %v490 = vsel %vm489, %v483, %v16
        %s491 = scalar_lea.vmem [#allocation20], 20
        %v492 = vpack.c.bf16 0.0, %v490
        %s494 = ssub.s32 16, 1
        %495 = vst [vmem:[%s491] sm:%s494] %v492
        %s496 = scalar_lea.vmem %s239, 24
        %s497 = ssub.s32 0, %s35
        %s498 = sor.u32 1, %s497
        %p499 = scmp.lt.s32.totalorder %s498, 0
        %s500 = scalar_select %p499, 0, 255
        %s501 = sshrl.u32 %s500, 1
        %s502 = sor.u32 %s500, %s501
        %s503 = sand.u32 %s502, 85
        %s504 = sshrl.u32 %s503, 1
        %s505 = sor.u32 %s503, %s504
        %s506 = sand.u32 51, %s505
        %s507 = sshrl.u32 %s506, 2
        %s508 = sor.u32 %s506, %s507
        %s509 = sand.u32 15, %s508
        %v510 = vld [vmem:[%s496] sm:%s509]
        %v511 = vunpack.c.l.bf16 %v510
        %v512 = vunpack.c.h.bf16 %v510
        %s513 = ssub.s32 0, %s35
        %s514 = sor.u32 1, %s513
        %v515 = vstv %s514
        %vm516 = vcmp.lt.s32.totalorder %v515, 0
        %v517 = vsel %vm516, %v16, %v511
        %s518 = smul.addr %s35, 128
        %v519 = vlaneseq
        %v520 = vand.u32 %v519, 127
        %v521 = vstv %s518
        %v522 = vadd.s32 %v520, %v521
        %vm523 = vcmp.lt.s32.totalorder %v522, 32
        %v524 = vsel %vm523, %v517, %v16
        %s525 = scalar_lea.vmem [#allocation20], 24
        %v526 = vpack.c.bf16 0.0, %v524
        %s528 = ssub.s32 16, 1
        %529 = vst [vmem:[%s525] sm:%s528] %v526
        %s530 = scalar_lea.vmem %s239, 28
        %s531 = ssub.s32 0, %s35
        %p532 = scmp.lt.s32.totalorder %s531, 0
        %s533 = scalar_select %p532, 0, 255
        %s534 = sshrl.u32 %s533, 1
        %s535 = sor.u32 %s533, %s534
        %s536 = sand.u32 %s535, 85
        %s537 = sshrl.u32 %s536, 1
        %s538 = sor.u32 %s536, %s537
        %s539 = sand.u32 51, %s538
        %s540 = sshrl.u32 %s539, 2
        %s541 = sor.u32 %s539, %s540
        %s542 = sand.u32 15, %s541
        %v543 = vld [vmem:[%s530] sm:%s542]
        %v544 = vunpack.c.l.bf16 %v543
        %v545 = vunpack.c.h.bf16 %v543
        %s546 = ssub.s32 0, %s35
        %v547 = vstv %s546
        %vm548 = vcmp.lt.s32.totalorder %v547, 0
        %v549 = vsel %vm548, %v16, %v544
        %s550 = smul.addr %s35, 128
        %v551 = vlaneseq
        %v552 = vand.u32 %v551, 127
        %v553 = vstv %s550
        %v554 = vadd.s32 %v552, %v553
        %vm555 = vcmp.lt.s32.totalorder %v554, 32
        %v556 = vsel %vm555, %v549, %v16
        %s557 = scalar_lea.vmem [#allocation20], 28
        %v558 = vpack.c.bf16 0.0, %v556
        %s560 = ssub.s32 16, 1
        %561 = vst [vmem:[%s557] sm:%s560] %v558
        %s562 = scalar_lea.vmem [#allocation20], 32
        %v563 = vpack.c.bf16 0.0, %v16
        %s565 = ssub.s32 16, 1
        %566 = vst [vmem:[%s562] sm:%s565] %v563
        %s567 = scalar_lea.vmem [#allocation20], 36
        %v568 = vpack.c.bf16 0.0, %v16
        %s570 = ssub.s32 16, 1
        %571 = vst [vmem:[%s567] sm:%s570] %v568
        %s572 = scalar_lea.vmem [#allocation20], 40
        %v573 = vpack.c.bf16 0.0, %v16
        %s575 = ssub.s32 16, 1
        %576 = vst [vmem:[%s572] sm:%s575] %v573
        %s577 = scalar_lea.vmem [#allocation20], 44
        %v578 = vpack.c.bf16 0.0, %v16
        %s580 = ssub.s32 16, 1
        %581 = vst [vmem:[%s577] sm:%s580] %v578
        %s582 = scalar_lea.vmem [#allocation20], 48
        %v583 = vpack.c.bf16 0.0, %v16
        %s585 = ssub.s32 16, 1
        %586 = vst [vmem:[%s582] sm:%s585] %v583
        %s587 = scalar_lea.vmem [#allocation20], 52
        %v588 = vpack.c.bf16 0.0, %v16
        %s590 = ssub.s32 16, 1
        %591 = vst [vmem:[%s587] sm:%s590] %v588
        %s592 = scalar_lea.vmem [#allocation20], 56
        %v593 = vpack.c.bf16 0.0, %v16
        %s595 = ssub.s32 16, 1
        %596 = vst [vmem:[%s592] sm:%s595] %v593
        %s597 = scalar_lea.vmem [#allocation20], 60
        %v598 = vpack.c.bf16 0.0, %v16
        %s600 = ssub.s32 16, 1
        %601 = vst [vmem:[%s597] sm:%s600] %v598
        %s602 = ssub.s32 0, %s35
        %p603 = scmp.lt.s32.totalorder %s602, 0
        %s604 = scalar_select %p603, 0, 255
        %s605 = sand.u32 1, %s604
        %s606 = sand.u32 1, %s605
        %v607 = vld [vmem:[%s246] sm:%s606]
        %s608 = ssub.s32 0, %s35
        %v609 = vstv %s608
        %vm610 = vcmp.lt.s32.totalorder %v609, 0
        %v611 = vsel %vm610, %v20, %v607
        %v612 = vlaneseq
        %v613 = vshrl.u32 %v612, 7
        %vm615 = vcmp.lt.s32.totalorder %v613, 1
        %v616 = vsel %vm615, %v611, %v20
        %s617 = smul.addr %s35, 128
        %v618 = vlaneseq
        %v619 = vand.u32 %v618, 127
        %v620 = vstv %s617
        %v621 = vadd.s32 %v619, %v620
        %vm622 = vcmp.lt.s32.totalorder %v621, 32
        %v623 = vsel %vm622, %v616, %v20
        %s625 = ssub.s32 2, 1
        %626 = vst [vmem:[#allocation21] sm:%s625] %v623
        %v628 = vld [vmem:[#allocation19] sm:$0xf]
        %v629 = vld [vmem:[#allocation19 + $0x4] sm:$0xf]
        %v630 = vld [vmem:[#allocation20] sm:$0xf]
        %v631 = vld [vmem:[#allocation20 + $0x4] sm:$0xf]
        %v632 = vld [vmem:[#allocation20 + $0x8] sm:$0xf]
        %v633 = vld [vmem:[#allocation20 + $0xc] sm:$0xf]
        %v634 = vld [vmem:[#allocation20 + $0x10] sm:$0xf]
        %v635 = vld [vmem:[#allocation20 + $0x14] sm:$0xf]
        %v636 = vld [vmem:[#allocation20 + $0x18] sm:$0xf]
        %v637 = vld [vmem:[#allocation20 + $0x1c] sm:$0xf]
        %v638 = vld [vmem:[#allocation20 + $0x20] sm:$0xf]
        %v639 = vld [vmem:[#allocation20 + $0x24] sm:$0xf]
        %v640 = vld [vmem:[#allocation20 + $0x28] sm:$0xf]
        %v641 = vld [vmem:[#allocation20 + $0x2c] sm:$0xf]
        %v642 = vld [vmem:[#allocation20 + $0x30] sm:$0xf]
        %v643 = vld [vmem:[#allocation20 + $0x34] sm:$0xf]
        %v644 = vld [vmem:[#allocation20 + $0x38] sm:$0xf]
        %v645 = vld [vmem:[#allocation20 + $0x3c] sm:$0xf]
        %v646 = vld [vmem:[#allocation21] sm:$0x1]
        %v648 = vlaneseq
        %v649 = vshrl.u32 %v648, 7
        %v650 = vsub.s32 0, %v649
        %v651 = vrot.slane %v646, %v650
        %v655 = vunpack.c.l.b16 %v628
        %v656 = vunpack.c.l.b16 %v629
        %v657 = vpack.c.b16 %v656, %v655
        %v675 = vunpack.c.l.b16 %v630
        %v676 = vunpack.c.l.b16 %v631
        %v677 = vunpack.c.l.b16 %v632
        %v678 = vunpack.c.l.b16 %v633
        %v679 = vunpack.c.l.b16 %v634
        %v680 = vunpack.c.l.b16 %v635
        %v681 = vunpack.c.l.b16 %v636
        %v682 = vunpack.c.l.b16 %v637
        %v683 = vunpack.c.l.b16 %v638
        %v684 = vunpack.c.l.b16 %v639
        %v685 = vunpack.c.l.b16 %v640
        %v686 = vunpack.c.l.b16 %v641
        %v687 = vunpack.c.l.b16 %v642
        %v688 = vunpack.c.l.b16 %v643
        %v689 = vunpack.c.l.b16 %v644
        %v690 = vunpack.c.l.b16 %v645
        %v691 = vpack.c.b16 %v676, %v675
        %v692 = vpack.c.b16 %v678, %v677
        %v693 = vpack.c.b16 %v680, %v679
        %v694 = vpack.c.b16 %v682, %v681
        %v695 = vpack.c.b16 %v684, %v683
        %v696 = vpack.c.b16 %v686, %v685
        %v697 = vpack.c.b16 %v688, %v687
        %v698 = vpack.c.b16 %v690, %v689
        %707 = vmatprep.subr.bf16.mxu0 0
        %708 = vmatpush1.bf16.msra.mxu0 %v698
        %709 = vmatprep.subr.bf16.mxu0 0
        %710 = vmatpush1.bf16.msra.mxu0 %v697
        %711 = vmatprep.subr.bf16.mxu0 0
        %712 = vmatpush1.bf16.msra.mxu0 %v696
        %713 = vmatprep.subr.bf16.mxu0 0
        %714 = vmatpush1.bf16.msra.mxu0 %v695
        %715 = vmatprep.subr.bf16.mxu0 0
        %716 = vmatpush1.bf16.msra.mxu0 %v694
        %717 = vmatprep.subr.bf16.mxu0 0
        %718 = vmatpush1.bf16.msra.mxu0 %v693
        %719 = vmatprep.subr.bf16.mxu0 0
        %720 = vmatpush1.bf16.msra.mxu0 %v692
        %721 = vmatprep.subr.bf16.mxu0 0
        %722 = vmatpush1.bf16.msra.mxu0 %v691
        %723 = vmatprep.subr.bf16.mxu0 0
        %724 = vmatpush2.bf16.msra.mxu0 0
        %725 = vmatprep.subr.bf16.mxu0 0
        %726 = vmatpush2.bf16.msra.mxu0 0
        %727 = vmatprep.subr.bf16.mxu0 0
        %728 = vmatpush2.bf16.msra.mxu0 0
        %729 = vmatprep.subr.bf16.mxu0 0
        %730 = vmatpush2.bf16.msra.mxu0 0
        %731 = vmatprep.subr.bf16.mxu0 0
        %732 = vmatpush2.bf16.msra.mxu0 0
        %733 = vmatprep.subr.bf16.mxu0 0
        %734 = vmatpush2.bf16.msra.mxu0 0
        %735 = vmatprep.subr.bf16.mxu0 0
        %736 = vmatpush2.bf16.msra.mxu0 0
        %737 = vmatprep.subr.bf16.mxu0 0
        %738 = vmatpush2.bf16.msra.mxu0 0
        %739 = vmatprep.mubr.bf16.mxu0 0
        %740 = vmatmul.mubr.bf16.gmra.mxu0 %v657
        %v741 = vpop.f32.mrf.mxu0
        %v742 = vadd.f32 %v651, %v741
        %v743 = vpop.f32.mrf.mxu0
        %v744 = vpop.f32.mrf.mxu0
        %v745 = vadd.f32 %v651, %v744
        %v746 = vpop.f32.mrf.mxu0
        %747 = vdwg.mxu0
        %748 = vst [vmem:[%s227] sm:$0xff] %v742
        %749 = vst [vmem:[%s227 + $0x8] sm:$0xff] %v745
        %s750 = sand.u32 %s130, 1
        %s751 = scalar_lea.sflag [#allocation18], %s750
        %s752 = sand.u32 %s130, 1
        %s753 = smul.addr %s752, 16
        %s754 = scalar_lea.vmem [#allocation17], %s753
        // Predicated region
        $region33: #{patch_embed.2} parent=31 // pred_check
          %p755 = pneg %p140
        $region34: #{patch_embed.2} parent=31 // pred_check_branch
          %757 = sbr.rel (%p755) target = $region36
        $region35: #{patch_embed.2} parent=31 // pred_region
          %s758 = smul.u32 2, %s34
          %s760 = ssub.s32 256, 256
          %761 = vsyncadd %s751, %s760
          %s762 = sadd.s32 %s35, %s758
          %s763 = smul.addr %s762, 128
          %s764 = scalar_lea.hbm %s5, %s763
          %s765 = sshll.u32 %s754, 4
          %s766 = int_to_ptr.vmem [resolvable:$true] %s765
          %771 = dma.vmem_to_hbm [thread:$0]  %s766, 256, %s764, %s751, 128, 128, 8
        $region36: #{patch_embed.2} parent=31 // pred_fallthru
          _
      $region32: #{patch_embed.2} parent=5 // pred_fallthru
        _
      %p772 = scmp.le.s32.totalorder 2, %s25
      // Predicated region
      $region37: #{patch_embed.2} parent=5 // pred_check
        %p773 = pneg %p772
      $region38: #{patch_embed.2} parent=5 // pred_check_branch
        %775 = sbr.rel (%p773) target = $region40
      $region39: #{patch_embed.2} parent=5 // pred_region
        %s776 = ssub.s32 %s25, 2
        // Predicated region
        $region41: #{patch_embed.2} parent=39 // pred_check
          %p777 = pneg %p146
        $region42: #{patch_embed.2} parent=39 // pred_check_branch
          %779 = sbr.rel (%p777) target = $region44
        $region43: #{patch_embed.2} parent=39 // pred_region
          %s780 = sand.u32 %s131, 1
          %s781 = scalar_lea.sflag [#allocation18], %s780
          %s782 = sand.u32 %s131, 1
          %s783 = smul.addr %s782, 16
          %s784 = scalar_lea.vmem [#allocation17], %s783
          %785 = dma.done %s781, 256
        $region44: #{patch_embed.2} parent=39 // pred_fallthru
          _
      $region40: #{patch_embed.2} parent=5 // pred_fallthru
        _
    $region6: #{patch_embed.2} parent=1 // loop_footer
      %s29 = sadd.s32 1, %s25
    $region7: #{patch_embed.2} parent=1 // loop_footer_branch
      %24 = sbr.rel target = $region3
    $region8: #{patch_embed.2} parent=1 // loop_exit
      _
    %786 = vsyncpa [#allocation18], 1
    %s787 = scalar_lea.sflag [#allocation18], 1
    %788 = vsyncpa %s787, 1

// kernel: patch_embed.1
$region0: #{patch_embed.1}
  #allocation0 [shape = 'u32[]', space=smem, size = 0x4, offset = 0x4, fixed_abs, tag = 'smem constant byte address 0x4 - core index']
  #allocation1 [shape = 'u32[144,128]{1,0:T(1,128)}', space=vmem, size = 0x12000, scoped, tag = 'internal scratch']
  %s0 = inlined_call_operand.vmem [shape: bf16[32,128], index: 0, kind: input, shape index: {}]
  %s1 = inlined_call_operand.vmem [shape: bf16[128,128], index: 1, kind: input, shape index: {}]
  %s2 = inlined_call_operand.vmem [shape: f32[1,128], index: 2, kind: input, shape index: {}]
  %s3 = inlined_call_operand.hbm [shape: f32[32,128], index: 3, kind: output, shape index: {}]
  %s4 = sld [smem:[#allocation0]]
  $region45: #{patch_embed.1} parent=0
    _
  %s6 = ssub.s32 1, %s4
  %s7 = scalar_select 0, %s6, %s4
  $region1: #{patch_embed.1} parent=0
    #allocation2 [shape = 'u8[16384]{0}', space=vmem, size = 0x4000, scoped, tag = 'output window, operand 0']
    #allocation3 [shape = 's32[2]{0}', space=sflag, size = 0x8, scoped, tag = 'scoped memory for patch_embed.1']
    %8 = vsyncpa [#allocation3], 0
    %s9 = scalar_lea.sflag [#allocation3], 1
    %10 = vsyncpa %s9, 0
    loop: start=0, step=1, limit=4
    $region2: #{patch_embed.1} parent=1 // loop_pre_header
      _
    $region3: #{patch_embed.1} parent=1 // loop_header
      %s12 = sphi 0, %s16
      %p13 = scmp.ge.s32.totalorder %s12, 4
      %s19 = sphi 0, %s31
      %s20 = sphi 0, %s27
      %s21 = sphi 0, %s19
      %s22 = sphi 0, %s20
      %s23 = sphi 0, %s21
      %s24 = sphi 0, %s22
      %s34 = sphi 0, %s36
      %s37 = sphi 0, %s34
      %s38 = sphi 0, %s37
      %s54 = sphi 0, %s38
      %s60 = sphi 0, %s62
      %s63 = sphi 0, %s60
      %s64 = sphi 0, %s63
      %s80 = sphi 0, %s64
      %s86 = sphi 0, %s88
      %s89 = sphi 0, %s86
      %s90 = sphi 0, %s89
      %s106 = sphi 0, %s90
      %s114 = sphi 0, %s116
      %s117 = sphi 0, %s114
      %s118 = sphi 0, %s117
      %s134 = sphi 0, %s118
    $region4: #{patch_embed.1} parent=1 // loop_header_branch
      %15 = sbr.rel (%p13) target = $region8
    $region5: #{patch_embed.1} parent=1 // loop_body
      %s17 = ssub.s32 %s12, 1
      %s18 = ssub.s32 %s12, 2
      %s25 = sadd.s32 1, %s20
      %p26 = scmp.ge.s32.totalorder %s25, 1
      %s27 = scalar_select %p26, 0, %s25
      %s28 = sadd.s32 1, %s19
      %s29 = scalar_select %p26, %s28, %s19
      %p30 = scmp.ge.s32.totalorder %s29, 2
      %s31 = scalar_select %p30, 0, %s29
      %s32 = ssub.s32 %s19, %s31
      %p33 = scmp.eq.s32.totalorder %s32, 0
      %s35 = sadd.s32 %s34, 1
      %s36 = scalar_select %p33, %s34, %s35
      %p39 = pneg %p33
      %p40 = scmp.eq.s32.totalorder %s12, 1
      %p41 = por %p39, %p40
      %p42 = scmp.ne.s32.totalorder %s34, %s37
      %p43 = scmp.eq.s32.totalorder %s12, 0
      %p44 = por %p42, %p43
      %p45 = scmp.ne.s32.totalorder %s34, %s37
      %p46 = scmp.eq.s32.totalorder %s17, 1
      %p47 = por %p45, %p46
      %p48 = scmp.ne.s32.totalorder %s37, %s38
      %p49 = scmp.eq.s32.totalorder %s17, 0
      %p50 = por %p48, %p49
      %p51 = scmp.ne.s32.totalorder %s37, %s38
      %p52 = scmp.eq.s32.totalorder %s18, 1
      %p53 = por %p51, %p52
      %p55 = scmp.ne.s32.totalorder %s38, %s54
      %p56 = scmp.eq.s32.totalorder %s18, 0
      %p57 = por %p55, %p56
      %s58 = ssub.s32 %s20, %s27
      %p59 = scmp.eq.s32.totalorder %s58, 0
      %s61 = sadd.s32 %s60, 1
      %s62 = scalar_select %p59, %s60, %s61
      %p65 = pneg %p59
      %p66 = scmp.eq.s32.totalorder %s12, 1
      %p67 = por %p65, %p66
      %p68 = scmp.ne.s32.totalorder %s60, %s63
      %p69 = scmp.eq.s32.totalorder %s12, 0
      %p70 = por %p68, %p69
      %p71 = scmp.ne.s32.totalorder %s60, %s63
      %p72 = scmp.eq.s32.totalorder %s17, 1
      %p73 = por %p71, %p72
      %p74 = scmp.ne.s32.totalorder %s63, %s64
      %p75 = scmp.eq.s32.totalorder %s17, 0
      %p76 = por %p74, %p75
      %p77 = scmp.ne.s32.totalorder %s63, %s64
      %p78 = scmp.eq.s32.totalorder %s18, 1
      %p79 = por %p77, %p78
      %p81 = scmp.ne.s32.totalorder %s64, %s80
      %p82 = scmp.eq.s32.totalorder %s18, 0
      %p83 = por %p81, %p82
      %s84 = ssub.s32 %s20, %s27
      %p85 = scmp.eq.s32.totalorder %s84, 0
      %s87 = sadd.s32 %s86, 1
      %s88 = scalar_select %p85, %s86, %s87
      %p91 = pneg %p85
      %p92 = scmp.eq.s32.totalorder %s12, 1
      %p93 = por %p91, %p92
      %p94 = scmp.ne.s32.totalorder %s86, %s89
      %p95 = scmp.eq.s32.totalorder %s12, 0
      %p96 = por %p94, %p95
      %p97 = scmp.ne.s32.totalorder %s86, %s89
      %p98 = scmp.eq.s32.totalorder %s17, 1
      %p99 = por %p97, %p98
      %p100 = scmp.ne.s32.totalorder %s89, %s90
      %p101 = scmp.eq.s32.totalorder %s17, 0
      %p102 = por %p100, %p101
      %p103 = scmp.ne.s32.totalorder %s89, %s90
      %p104 = scmp.eq.s32.totalorder %s18, 1
      %p105 = por %p103, %p104
      %p107 = scmp.ne.s32.totalorder %s90, %s106
      %p108 = scmp.eq.s32.totalorder %s18, 0
      %p109 = por %p107, %p108
      %s110 = ssub.s32 %s19, %s31
      %s111 = ssub.s32 %s20, %s27
      %s112 = sor.u32 %s110, %s111
      %p113 = scmp.eq.s32.totalorder %s112, 0
      %s115 = sadd.s32 %s114, 1
      %s116 = scalar_select %p113, %s114, %s115
      %p119 = pneg %p113
      %p120 = scmp.eq.s32.totalorder %s12, 1
      %p121 = por %p119, %p120
      %p122 = scmp.ne.s32.totalorder %s114, %s117
      %p123 = scmp.eq.s32.totalorder %s12, 0
      %p124 = por %p122, %p123
      %p125 = scmp.ne.s32.totalorder %s114, %s117
      %p126 = scmp.eq.s32.totalorder %s17, 1
      %p127 = por %p125, %p126
      %p128 = scmp.ne.s32.totalorder %s117, %s118
      %p129 = scmp.eq.s32.totalorder %s17, 0
      %p130 = por %p128, %p129
      %p131 = scmp.ne.s32.totalorder %s117, %s118
      %p132 = scmp.eq.s32.totalorder %s18, 1
      %p133 = por %p131, %p132
      %p135 = scmp.ne.s32.totalorder %s118, %s134
      %p136 = scmp.eq.s32.totalorder %s18, 0
      %p137 = por %p135, %p136
      %p138 = scmp.le.s32.totalorder 1, %s12
      %p139 = scmp.lt.s32.totalorder %s12, 3
      %p140 = pnand %p138, %p139
      %p141 = pneg %p140
      // Predicated region
      $region9: #{patch_embed.1} parent=5 // pred_check
        _
      $region10: #{patch_embed.1} parent=5 // pred_check_branch
        %143 = sbr.rel (%p140) target = $region12
      $region11: #{patch_embed.1} parent=5 // pred_region
        %s144 = ssub.s32 %s12, 1
        // Predicated region
        $region13: #{patch_embed.1} parent=11 // pred_check
          %p145 = pneg %p76
        $region14: #{patch_embed.1} parent=11 // pred_check_branch
          %147 = sbr.rel (%p145) target = $region16
        $region15: #{patch_embed.1} parent=11 // pred_region
          %p148 = scmp.lt.s32.totalorder %s22, 0
          %s149 = scalar_select %p148, %s22, 0
          %s150 = smul.addr %s149, 4
          %s151 = scalar_lea.vmem %s1, %s150
        $region16: #{patch_embed.1} parent=11 // pred_fallthru
          _
        // Predicated region
        $region17: #{patch_embed.1} parent=11 // pred_check
          %p152 = pneg %p102
        $region18: #{patch_embed.1} parent=11 // pred_check_branch
          %154 = sbr.rel (%p152) target = $region20
        $region19: #{patch_embed.1} parent=11 // pred_region
          %p155 = scmp.lt.s32.totalorder %s22, 0
          %s156 = scalar_select %p155, %s22, 0
          %s157 = scalar_lea.vmem %s2, %s156
        $region20: #{patch_embed.1} parent=11 // pred_fallthru
          _
      $region12: #{patch_embed.1} parent=5 // pred_fallthru
        _
      %p158 = scmp.lt.s32.totalorder %s12, 2
      // Predicated region
      $region21: #{patch_embed.1} parent=5 // pred_check
        %p159 = pneg %p158
      $region22: #{patch_embed.1} parent=5 // pred_check_branch
        %161 = sbr.rel (%p159) target = $region24
      $region23: #{patch_embed.1} parent=5 // pred_region
        // Predicated region
        $region25: #{patch_embed.1} parent=23 // pred_check
          %p162 = pneg %p44
        $region26: #{patch_embed.1} parent=23 // pred_check_branch
          %164 = sbr.rel (%p162) target = $region28
        $region27: #{patch_embed.1} parent=23 // pred_region
          %s165 = smul.u32 2, %s19
          %p166 = scmp.lt.s32.totalorder %s165, 3
          %s167 = scalar_select %p166, %s165, 3
          %s168 = smul.addr %s167, 4
          %s169 = scalar_lea.vmem %s0, %s168
          %s170 = smul.u32 2, %s19
        $region28: #{patch_embed.1} parent=23 // pred_fallthru
          _
      $region24: #{patch_embed.1} parent=5 // pred_fallthru
        _
      %p171 = scmp.le.s32.totalorder 1, %s12
      %p172 = scmp.lt.s32.totalorder %s12, 3
      %p173 = pnand %p171, %p172
      %p174 = pneg %p173
      // Predicated region
      $region29: #{patch_embed.1} parent=5 // pred_check
        _
      $region30: #{patch_embed.1} parent=5 // pred_check_branch
        %176 = sbr.rel (%p173) target = $region32
      $region31: #{patch_embed.1} parent=5 // pred_region
        %s177 = ssub.s32 %s12, 1
        %s178 = smul.u32 2, %s21
        %p179 = scmp.lt.s32.totalorder %s178, 3
        %s180 = scalar_select %p179, %s178, 3
        %s181 = smul.addr %s180, 4
        %s182 = scalar_lea.vmem %s0, %s181
        %p183 = pneg %p50
        %p184 = pneg %p47
        %p185 = scmp.lt.s32.totalorder %s22, 0
        %s186 = scalar_select %p185, %s22, 0
        %s187 = smul.addr %s186, 4
        %s188 = scalar_lea.vmem %s1, %s187
        %p189 = pneg %p76
        %p190 = pneg %p73
        %p191 = scmp.lt.s32.totalorder %s22, 0
        %s192 = scalar_select %p191, %s22, 0
        %s193 = scalar_lea.vmem %s2, %s192
        %p194 = pneg %p102
        %p195 = pneg %p99
        %p196 = pneg %p130
        %p197 = pneg %p127
        %s198 = sand.u32 %s117, 1
        %s199 = scalar_lea.sflag [#allocation3], %s198
        %s200 = sand.u32 %s117, 1
        %s201 = smul.addr %s200, 16
        %s202 = scalar_lea.vmem [#allocation2], %s201
        %s203 = smul.u32 2, %s21
        %p204 = scmp.lt.s32.totalorder %s203, 3
        %s205 = scalar_select %p204, %s203, 3
        %s206 = smul.addr %s205, 4
        %s207 = scalar_lea.vmem %s0, %s206
        %s208 = smul.u32 2, %s21
        %p209 = scmp.lt.s32.totalorder %s22, 0
        %s210 = scalar_select %p209, %s22, 0
        %s211 = smul.addr %s210, 4
        %s212 = scalar_lea.vmem %s1, %s211
        %p213 = scmp.lt.s32.totalorder %s22, 0
        %s214 = scalar_select %p213, %s22, 0
        %s215 = scalar_lea.vmem %s2, %s214
        %s216 = smul.u32 2, %s21
        %v218 = vld [vmem:[%s207] sm:$0xf]
        %v219 = vld [vmem:[%s207 + $0x4] sm:$0xf]
        %v220 = vld [vmem:[%s212] sm:$0xf]
        %v221 = vld [vmem:[%s212 + $0x4] sm:$0xf]
        %v222 = vld [vmem:[%s212 + $0x8] sm:$0xf]
        %v223 = vld [vmem:[%s212 + $0xc] sm:$0xf]
        %v224 = vld [vmem:[%s212 + $0x10] sm:$0xf]
        %v225 = vld [vmem:[%s212 + $0x14] sm:$0xf]
        %v226 = vld [vmem:[%s212 + $0x18] sm:$0xf]
        %v227 = vld [vmem:[%s212 + $0x1c] sm:$0xf]
        %v228 = vld [vmem:[%s212 + $0x20] sm:$0xf]
        %v229 = vld [vmem:[%s212 + $0x24] sm:$0xf]
        %v230 = vld [vmem:[%s212 + $0x28] sm:$0xf]
        %v231 = vld [vmem:[%s212 + $0x2c] sm:$0xf]
        %v232 = vld [vmem:[%s212 + $0x30] sm:$0xf]
        %v233 = vld [vmem:[%s212 + $0x34] sm:$0xf]
        %v234 = vld [vmem:[%s212 + $0x38] sm:$0xf]
        %v235 = vld [vmem:[%s212 + $0x3c] sm:$0xf]
        %v236 = vld [vmem:[%s215] sm:$0x1]
        %v238 = vlaneseq
        %v239 = vshrl.u32 %v238, 7
        %v240 = vsub.s32 0, %v239
        %v241 = vrot.slane %v236, %v240
        %v245 = vunpack.c.l.b16 %v218
        %v246 = vunpack.c.l.b16 %v219
        %v247 = vpack.c.b16 %v246, %v245
        %v265 = vunpack.c.l.b16 %v220
        %v266 = vunpack.c.l.b16 %v221
        %v267 = vunpack.c.l.b16 %v222
        %v268 = vunpack.c.l.b16 %v223
        %v269 = vunpack.c.l.b16 %v224
        %v270 = vunpack.c.l.b16 %v225
        %v271 = vunpack.c.l.b16 %v226
        %v272 = vunpack.c.l.b16 %v227
        %v273 = vunpack.c.l.b16 %v228
        %v274 = vunpack.c.l.b16 %v229
        %v275 = vunpack.c.l.b16 %v230
        %v276 = vunpack.c.l.b16 %v231
        %v277 = vunpack.c.l.b16 %v232
        %v278 = vunpack.c.l.b16 %v233
        %v279 = vunpack.c.l.b16 %v234
        %v280 = vunpack.c.l.b16 %v235
        %v281 = vpack.c.b16 %v266, %v265
        %v282 = vpack.c.b16 %v268, %v267
        %v283 = vpack.c.b16 %v270, %v269
        %v284 = vpack.c.b16 %v272, %v271
        %v285 = vpack.c.b16 %v274, %v273
        %v286 = vpack.c.b16 %v276, %v275
        %v287 = vpack.c.b16 %v278, %v277
        %v288 = vpack.c.b16 %v280, %v279
        %297 = vmatprep.subr.bf16.mxu0 0
        %298 = vmatpush1.bf16.msra.mxu0 %v288
        %299 = vmatprep.subr.bf16.mxu0 0
        %300 = vmatpush1.bf16.msra.mxu0 %v287
        %301 = vmatprep.subr.bf16.mxu0 0
        %302 = vmatpush1.bf16.msra.mxu0 %v286
        %303 = vmatprep.subr.bf16.mxu0 0
        %304 = vmatpush1.bf16.msra.mxu0 %v285
        %305 = vmatprep.subr.bf16.mxu0 0
        %306 = vmatpush1.bf16.msra.mxu0 %v284
        %307 = vmatprep.subr.bf16.mxu0 0
        %308 = vmatpush1.bf16.msra.mxu0 %v283
        %309 = vmatprep.subr.bf16.mxu0 0
        %310 = vmatpush1.bf16.msra.mxu0 %v282
        %311 = vmatprep.subr.bf16.mxu0 0
        %312 = vmatpush1.bf16.msra.mxu0 %v281
        %313 = vmatprep.subr.bf16.mxu0 0
        %314 = vmatpush2.bf16.msra.mxu0 0
        %315 = vmatprep.subr.bf16.mxu0 0
        %316 = vmatpush2.bf16.msra.mxu0 0
        %317 = vmatprep.subr.bf16.mxu0 0
        %318 = vmatpush2.bf16.msra.mxu0 0
        %319 = vmatprep.subr.bf16.mxu0 0
        %320 = vmatpush2.bf16.msra.mxu0 0
        %321 = vmatprep.subr.bf16.mxu0 0
        %322 = vmatpush2.bf16.msra.mxu0 0
        %323 = vmatprep.subr.bf16.mxu0 0
        %324 = vmatpush2.bf16.msra.mxu0 0
        %325 = vmatprep.subr.bf16.mxu0 0
        %326 = vmatpush2.bf16.msra.mxu0 0
        %327 = vmatprep.subr.bf16.mxu0 0
        %328 = vmatpush2.bf16.msra.mxu0 0
        %329 = vmatprep.mubr.bf16.mxu0 0
        %330 = vmatmul.mubr.bf16.gmra.mxu0 %v247
        %v331 = vpop.f32.mrf.mxu0
        %v332 = vadd.f32 %v241, %v331
        %v333 = vpop.f32.mrf.mxu0
        %v334 = vpop.f32.mrf.mxu0
        %v335 = vadd.f32 %v241, %v334
        %v336 = vpop.f32.mrf.mxu0
        %337 = vdwg.mxu0
        %338 = vst [vmem:[%s202] sm:$0xff] %v332
        %339 = vst [vmem:[%s202 + $0x8] sm:$0xff] %v335
        %s340 = sand.u32 %s117, 1
        %s341 = scalar_lea.sflag [#allocation3], %s340
        %s342 = sand.u32 %s117, 1
        %s343 = smul.addr %s342, 16
        %s344 = scalar_lea.vmem [#allocation2], %s343
        // Predicated region
        $region33: #{patch_embed.1} parent=31 // pred_check
          %p345 = pneg %p127
        $region34: #{patch_embed.1} parent=31 // pred_check_branch
          %347 = sbr.rel (%p345) target = $region36
        $region35: #{patch_embed.1} parent=31 // pred_region
          %s348 = smul.u32 2, %s21
          %s350 = ssub.s32 256, 256
          %351 = vsyncadd %s341, %s350
          %s352 = sadd.s32 %s22, %s348
          %s353 = smul.addr %s352, 128
          %s354 = scalar_lea.hbm %s3, %s353
          %s355 = sshll.u32 %s344, 4
          %s356 = int_to_ptr.vmem [resolvable:$true] %s355
          %361 = dma.vmem_to_hbm [thread:$0]  %s356, 256, %s354, %s341, 128, 128, 8
        $region36: #{patch_embed.1} parent=31 // pred_fallthru
          _
      $region32: #{patch_embed.1} parent=5 // pred_fallthru
        _
      %p362 = scmp.le.s32.totalorder 2, %s12
      // Predicated region
      $region37: #{patch_embed.1} parent=5 // pred_check
        %p363 = pneg %p362
      $region38: #{patch_embed.1} parent=5 // pred_check_branch
        %365 = sbr.rel (%p363) target = $region40
      $region39: #{patch_embed.1} parent=5 // pred_region
        %s366 = ssub.s32 %s12, 2
        // Predicated region
        $region41: #{patch_embed.1} parent=39 // pred_check
          %p367 = pneg %p133
        $region42: #{patch_embed.1} parent=39 // pred_check_branch
          %369 = sbr.rel (%p367) target = $region44
        $region43: #{patch_embed.1} parent=39 // pred_region
          %s370 = sand.u32 %s118, 1
          %s371 = scalar_lea.sflag [#allocation3], %s370
          %s372 = sand.u32 %s118, 1
          %s373 = smul.addr %s372, 16
          %s374 = scalar_lea.vmem [#allocation2], %s373
          %375 = dma.done %s371, 256
        $region44: #{patch_embed.1} parent=39 // pred_fallthru
          _
      $region40: #{patch_embed.1} parent=5 // pred_fallthru
        _
    $region6: #{patch_embed.1} parent=1 // loop_footer
      %s16 = sadd.s32 1, %s12
    $region7: #{patch_embed.1} parent=1 // loop_footer_branch
      %11 = sbr.rel target = $region3
    $region8: #{patch_embed.1} parent=1 // loop_exit
      _
    %376 = vsyncpa [#allocation3], 1
    %s377 = scalar_lea.sflag [#allocation3], 1
    %378 = vsyncpa %s377, 1

</llo_original>
